<compile_context>
chip_gen: v6e
topology: v6e:2x2x1
jax: 0.10.0
libtpu: 0.0.40
codegen_flags: <defaults>
</compile_context>

<pallas_src>
import math

import numpy as np

import jax
import jax.numpy as jnp
from jax import lax
from jax.experimental import pallas as pl
from jax.experimental.pallas import tpu as pltpu

# ---- model hyper-parameters (small, consistent with the module) -------------
B, T, D, H = 2, 8, 32, 4
HD = D // H                      # head dim
N = B * T                        # flattened token count (matmul M dim)
LN_EPS = 1e-5
NEG_BIG = -1e30                  # finite "masked" value

# ---- packed constant-slab layout (all f32, 128 lanes wide) -------------------
LANES = 128
ROW_GAMMA, ROW_BETA, ROW_BQ, ROW_BK, ROW_BV, ROW_B2, ROW_B1 = 0, 1, 2, 3, 4, 5, 6
ROW_CAUSAL = 8                   # (N, H*N)   additive causal mask
ROW_BSS = 24                     # (H*N, H*N) per-head-block row-sum matrix
ROW_SEL = 88                     # (H*N, D)   head-selection mask
ROW_REP = 152                    # (H*N, N)   H-fold row replication matrix
ROW_WQ = 216                     # (D, D)     1/sqrt(HD) pre-folded
ROW_WK = 248                     # (D, D)
ROW_WV = 280                     # (D, D)
ROW_W1 = 312                     # (D, 4D)
ROW_W2T = 344                    # (D, 4D)    w2 stored transposed
SLAB_ROWS = 376                  # multiple of 8; slab = 376*128*4 B ~ 188 KiB

_CONTRACT_LAST = (((1,), (1,)), ((), ()))   # A(m,k) . B(n,k) -> (m,n), no transpose op


def _layernorm(z, gamma, beta):
    mu = jnp.mean(z, axis=-1, keepdims=True)
    var = jnp.mean((z - mu) ** 2, axis=-1, keepdims=True)
    return (z - mu) * lax.rsqrt(var + LN_EPS) * gamma + beta


def _gelu_exact(z):
    # torch nn.GELU() default = exact erf-based GELU (tanh approx rejected to
    # keep the reference semantics; the erf poly runs on otherwise-slack VPU).
    return 0.5 * z * (1.0 + lax.erf(z * (1.0 / math.sqrt(2.0))))


def gpt_block_kernel(x_ref, c_ref, out_ref):
    f32 = jnp.float32
    x = x_ref[...]                                           # (N, D) batch folded into rows

    # ---- static, tile-aligned unpack of the constant slab --------------------
    gamma = c_ref[ROW_GAMMA:ROW_GAMMA + 1, 0:D]
    beta = c_ref[ROW_BETA:ROW_BETA + 1, 0:D]
    bq = c_ref[ROW_BQ:ROW_BQ + 1, 0:D]
    bk = c_ref[ROW_BK:ROW_BK + 1, 0:D]
    bv = c_ref[ROW_BV:ROW_BV + 1, 0:D]
    b2 = c_ref[ROW_B2:ROW_B2 + 1, 0:D]
    b1 = c_ref[ROW_B1:ROW_B1 + 1, 0:4 * D]
    causal = c_ref[ROW_CAUSAL:ROW_CAUSAL + N, 0:H * N]       # additive 0 / -1e30
    bss = c_ref[ROW_BSS:ROW_BSS + H * N, 0:H * N]
    sel = c_ref[ROW_SEL:ROW_SEL + H * N, 0:D]
    rep = c_ref[ROW_REP:ROW_REP + H * N, 0:N]
    wq = c_ref[ROW_WQ:ROW_WQ + D, 0:D]                       # softmax scale pre-folded
    wk = c_ref[ROW_WK:ROW_WK + D, 0:D]
    wv = c_ref[ROW_WV:ROW_WV + D, 0:D]
    w1 = c_ref[ROW_W1:ROW_W1 + D, 0:4 * D]
    w2t = c_ref[ROW_W2T:ROW_W2T + D, 0:4 * D]                # w2 transposed at pack time

    # ---- self-attention branch: sa(ln(x)) -------------------------------------
    ln1 = _layernorm(x, gamma, beta)
    q = jnp.dot(ln1, wq, preferred_element_type=f32) + bq    # (N, D), pre-scaled
    k = jnp.dot(ln1, wk, preferred_element_type=f32) + bk    # (N, D)
    v = jnp.dot(ln1, wv, preferred_element_type=f32) + bv    # (N, D)

    # Head-block-diagonal K^T / V built on the MXU (no transpose / concatenate):
    #   kbig_t[h*N + j, d] = k[j, d] if d belongs to head h else 0 (same for v).
    kbig_t = jnp.dot(rep, k, preferred_element_type=f32) * sel    # (H*N, D)
    vbig = jnp.dot(rep, v, preferred_element_type=f32) * sel      # (H*N, D)

    # Scores for all heads/batches at once; contract last dims (A @ B^T pattern)
    s = lax.dot_general(q, kbig_t, _CONTRACT_LAST,
                        preferred_element_type=f32) + causal      # (N, H*N)

    # Per-row max shared across head blocks (exact while no block underflows);
    # denominator clamped below so a fully-underflowed block cannot produce NaN.
    m = jnp.max(s, axis=-1, keepdims=True)
    e = jnp.exp(s - m)                                            # masked entries -> 0
    denom = jnp.dot(e, bss, preferred_element_type=f32)           # per-head-block row sums
    p = e * pl.reciprocal(denom + 1e-30, approx=True)             # EUP divide

    sa = jnp.dot(p, vbig, preferred_element_type=f32)             # (N, D)
    # reference SelfAttention never applies self.project; dropouts are identity

    x1 = x + sa

    # ---- MLP branch: mlp(ln(x1)) — the module reuses the SAME LayerNorm -------
    ln2 = _layernorm(x1, gamma, beta)
    hmid = jnp.dot(ln2, w1, preferred_element_type=f32) + b1      # (N, 4D)
    hmid = _gelu_exact(hmid)
    mlp = lax.dot_general(hmid, w2t, _CONTRACT_LAST,
                          preferred_element_type=f32) + b2        # (N, D)

    out_ref[...] = x1 + mlp


def pack_params(params):
    """One-time host-side packing of weights + precomputed constants into a
    single (SLAB_ROWS, 128) f32 slab (one HBM->VMEM DMA).  Every item starts
    at a sublane offset that is a multiple of 8 and lane offset 0."""
    wqkv, bqkv, gamma, beta, w1, b1, w2, b2 = (np.asarray(p, np.float32) for p in params)
    scale = 1.0 / math.sqrt(HD)

    slab = np.zeros((SLAB_ROWS, LANES), np.float32)
    slab[ROW_GAMMA, :D] = gamma[0]
    slab[ROW_BETA, :D] = beta[0]
    slab[ROW_BQ, :D] = bqkv[0, 0:D] * scale            # softmax scale folded in
    slab[ROW_BK, :D] = bqkv[0, D:2 * D]
    slab[ROW_BV, :D] = bqkv[0, 2 * D:3 * D]
    slab[ROW_B2, :D] = b2[0]
    slab[ROW_B1, :4 * D] = b1[0]

    # additive causal mask: block-diagonal per batch, identical for every head block
    i = np.arange(N)[:, None]
    c = np.arange(H * N)[None, :]
    j = c % N                                          # token index inside a head block
    valid = ((i // T) == (j // T)) & (j <= i)
    slab[ROW_CAUSAL:ROW_CAUSAL + N, :H * N] = np.where(valid, 0.0, NEG_BIG)

    r = np.arange(H * N)[:, None]
    slab[ROW_BSS:ROW_BSS + H * N, :H * N] = (r // N == np.arange(H * N)[None, :] // N)
    slab[ROW_SEL:ROW_SEL + H * N, :D] = (r // N == np.arange(D)[None, :] // HD)
    slab[ROW_REP:ROW_REP + H * N, :N] = (r % N == np.arange(N)[None, :])

    slab[ROW_WQ:ROW_WQ + D, :D] = wqkv[:, 0:D] * scale  # softmax scale folded in
    slab[ROW_WK:ROW_WK + D, :D] = wqkv[:, D:2 * D]
    slab[ROW_WV:ROW_WV + D, :D] = wqkv[:, 2 * D:3 * D]
    slab[ROW_W1:ROW_W1 + D, :4 * D] = w1
    slab[ROW_W2T:ROW_W2T + D, :4 * D] = w2.T            # stored transposed
    return jnp.asarray(slab)


@jax.jit
def gpt_block(x, slab):
    x2 = x.reshape(N, D)                                # fold batch into the matmul M dim
    vmem = lambda: pl.BlockSpec(memory_space=pltpu.MemorySpace.VMEM)
    out2 = pl.pallas_call(
        gpt_block_kernel,
        out_shape=jax.ShapeDtypeStruct((N, D), jnp.float32),
        in_specs=[vmem(), vmem()],                      # 2 DMAs total (x + slab)
        out_specs=vmem(),
    )(x2, slab)
    return out2.reshape(B, T, D)


# ---- pure-JAX reference for a correctness check ------------------------------
def gpt_block_ref(x, params):
    wqkv, bqkv, gamma, beta, w1, b1, w2, b2 = params

    def ln(z):
        mu = jnp.mean(z, axis=-1, keepdims=True)
        var = jnp.mean((z - mu) ** 2, axis=-1, keepdims=True)
        return (z - mu) / jnp.sqrt(var + LN_EPS) * gamma + beta

    l = ln(x)
    qkv = l @ wqkv + bqkv                                   # (B, T, 3D)
    qkv = qkv.reshape(B, T, 3, H, HD).transpose(2, 0, 3, 1, 4)
    q, k, v = qkv[0], qkv[1], qkv[2]                        # (B, H, T, HD)
    attn = q @ jnp.swapaxes(k, -2, -1) * (1.0 / math.sqrt(HD))
    mask = jnp.tril(jnp.ones((T, T)))[None, None]
    attn = jnp.where(mask == 0, -jnp.inf, attn)
    attn = jax.nn.softmax(attn, axis=-1)
    sa = attn @ v                                           # (B, H, T, HD)
    sa = jnp.transpose(sa, (0, 2, 1, 3)).reshape(B, T, D)
    x = x + sa
    l2 = ln(x)
    m = jax.nn.gelu(l2 @ w1 + b1, approximate=False) @ w2 + b2
    return x + m


def make_params(key):
    ks = jax.random.split(key, 8)
    s = 0.02
    wqkv = s * jax.random.normal(ks[0], (D, 3 * D), jnp.float32)
    bqkv = s * jax.random.normal(ks[1], (1, 3 * D), jnp.float32)
    gamma = 1.0 + 0.1 * jax.random.normal(ks[2], (1, D), jnp.float32)
    beta = 0.05 * jax.random.normal(ks[3], (1, D), jnp.float32)
    w1 = s * jax.random.normal(ks[4], (D, 4 * D), jnp.float32)
    b1 = s * jax.random.normal(ks[5], (1, 4 * D), jnp.float32)
    w2 = s * jax.random.normal(ks[6], (4 * D, D), jnp.float32)
    b2 = s * jax.random.normal(ks[7], (1, D), jnp.float32)
    return (wqkv, bqkv, gamma, beta, w1, b1, w2, b2)


if __name__ == "__main__":
    key = jax.random.PRNGKey(0)
    kx, kp = jax.random.split(key)
    x = jax.random.normal(kx, (B, T, D), jnp.float32)
    params = make_params(kp)
    slab = pack_params(params)          # one-time host-side weight/constant packing

    out = jax.block_until_ready(gpt_block(x, slab))
    ref = gpt_block_ref(x, params)

    assert out.shape == (B, T, D)
    err = float(jnp.max(jnp.abs(out - ref)))
    # tolerance covers the approx EUP reciprocal in the softmax denominator
    assert jnp.allclose(out, ref, atol=2e-3, rtol=2e-3), err
    print("KERNEL_OK")
</pallas_src>

<mosaic_0001>
module attributes {stable_mosaic.version = 11 : i64} {
  func.func @gpt_block_kernel(%arg0: memref<16x32xf32, #tpu.memory_space<vmem>>, %arg1: memref<376x128xf32, #tpu.memory_space<vmem>>, %arg2: memref<16x32xf32, #tpu.memory_space<vmem>>) attributes {dimension_semantics = [], scalar_prefetch = 0 : i64, scratch_operands = 0 : i64, tpu.core_type = #tpu.core_type<tc>} {
    %c0 = arith.constant 0 : index
    %c0_0 = arith.constant 0 : index
    %0 = vector.load %arg0[%c0, %c0_0] : memref<16x32xf32, #tpu.memory_space<vmem>>, vector<16x32xf32>
    %c0_1 = arith.constant 0 : index
    %c0_2 = arith.constant 0 : index
    %1 = vector.load %arg1[%c0_1, %c0_2] : memref<376x128xf32, #tpu.memory_space<vmem>>, vector<1x32xf32>
    %c1 = arith.constant 1 : index
    %c0_3 = arith.constant 0 : index
    %2 = vector.load %arg1[%c1, %c0_3] : memref<376x128xf32, #tpu.memory_space<vmem>>, vector<1x32xf32>
    %c2 = arith.constant 2 : index
    %c0_4 = arith.constant 0 : index
    %3 = vector.load %arg1[%c2, %c0_4] : memref<376x128xf32, #tpu.memory_space<vmem>>, vector<1x32xf32>
    %c3 = arith.constant 3 : index
    %c0_5 = arith.constant 0 : index
    %4 = vector.load %arg1[%c3, %c0_5] : memref<376x128xf32, #tpu.memory_space<vmem>>, vector<1x32xf32>
    %c4 = arith.constant 4 : index
    %c0_6 = arith.constant 0 : index
    %5 = vector.load %arg1[%c4, %c0_6] : memref<376x128xf32, #tpu.memory_space<vmem>>, vector<1x32xf32>
    %c5 = arith.constant 5 : index
    %c0_7 = arith.constant 0 : index
    %6 = vector.load %arg1[%c5, %c0_7] : memref<376x128xf32, #tpu.memory_space<vmem>>, vector<1x32xf32>
    %c6 = arith.constant 6 : index
    %c0_8 = arith.constant 0 : index
    %7 = vector.load %arg1[%c6, %c0_8] : memref<376x128xf32, #tpu.memory_space<vmem>>, vector<1x128xf32>
    %c8 = arith.constant 8 : index
    %c0_9 = arith.constant 0 : index
    %8 = vector.load %arg1[%c8, %c0_9] : memref<376x128xf32, #tpu.memory_space<vmem>>, vector<16x64xf32>
    %c24 = arith.constant 24 : index
    %c0_10 = arith.constant 0 : index
    %9 = vector.load %arg1[%c24, %c0_10] : memref<376x128xf32, #tpu.memory_space<vmem>>, vector<64x64xf32>
    %c88 = arith.constant 88 : index
    %c0_11 = arith.constant 0 : index
    %10 = vector.load %arg1[%c88, %c0_11] : memref<376x128xf32, #tpu.memory_space<vmem>>, vector<64x32xf32>
    %c152 = arith.constant 152 : index
    %c0_12 = arith.constant 0 : index
    %11 = vector.load %arg1[%c152, %c0_12] : memref<376x128xf32, #tpu.memory_space<vmem>>, vector<64x16xf32>
    %c216 = arith.constant 216 : index
    %c0_13 = arith.constant 0 : index
    %12 = vector.load %arg1[%c216, %c0_13] : memref<376x128xf32, #tpu.memory_space<vmem>>, vector<32x32xf32>
    %c248 = arith.constant 248 : index
    %c0_14 = arith.constant 0 : index
    %13 = vector.load %arg1[%c248, %c0_14] : memref<376x128xf32, #tpu.memory_space<vmem>>, vector<32x32xf32>
    %c280 = arith.constant 280 : index
    %c0_15 = arith.constant 0 : index
    %14 = vector.load %arg1[%c280, %c0_15] : memref<376x128xf32, #tpu.memory_space<vmem>>, vector<32x32xf32>
    %c312 = arith.constant 312 : index
    %c0_16 = arith.constant 0 : index
    %15 = vector.load %arg1[%c312, %c0_16] : memref<376x128xf32, #tpu.memory_space<vmem>>, vector<32x128xf32>
    %c344 = arith.constant 344 : index
    %c0_17 = arith.constant 0 : index
    %16 = vector.load %arg1[%c344, %c0_17] : memref<376x128xf32, #tpu.memory_space<vmem>>, vector<32x128xf32>
    %cst = arith.constant dense<0.000000e+00> : vector<16xf32>
    %17 = vector.multi_reduction <add>, %0, %cst [1] : vector<16x32xf32> to vector<16xf32>
    %18 = vector.shape_cast %17 : vector<16xf32> to vector<16x1xf32>
    %cst_18 = arith.constant 3.200000e+01 : f32
    %19 = vector.broadcast %cst_18 : f32 to vector<16x1xf32>
    %20 = arith.divf %18, %19 : vector<16x1xf32>
    %21 = vector.broadcast %20 : vector<16x1xf32> to vector<16x32xf32>
    %22 = arith.subf %0, %21 : vector<16x32xf32>
    %23 = arith.mulf %22, %22 : vector<16x32xf32>
    %cst_19 = arith.constant dense<0.000000e+00> : vector<16xf32>
    %24 = vector.multi_reduction <add>, %23, %cst_19 [1] : vector<16x32xf32> to vector<16xf32>
    %25 = vector.shape_cast %24 : vector<16xf32> to vector<16x1xf32>
    %cst_20 = arith.constant 3.200000e+01 : f32
    %26 = vector.broadcast %cst_20 : f32 to vector<16x1xf32>
    %27 = arith.divf %25, %26 : vector<16x1xf32>
    %28 = vector.broadcast %20 : vector<16x1xf32> to vector<16x32xf32>
    %29 = arith.subf %0, %28 : vector<16x32xf32>
    %cst_21 = arith.constant 9.99999974E-6 : f32
    %30 = vector.broadcast %cst_21 : f32 to vector<16x1xf32>
    %31 = arith.addf %27, %30 : vector<16x1xf32>
    %32 = math.rsqrt %31 : vector<16x1xf32>
    %33 = vector.broadcast %32 : vector<16x1xf32> to vector<16x32xf32>
    %34 = arith.mulf %29, %33 : vector<16x32xf32>
    %35 = vector.broadcast %1 : vector<1x32xf32> to vector<16x32xf32>
    %36 = arith.mulf %34, %35 : vector<16x32xf32>
    %37 = vector.broadcast %2 : vector<1x32xf32> to vector<16x32xf32>
    %38 = arith.addf %36, %37 : vector<16x32xf32>
    %cst_22 = arith.constant dense<0.000000e+00> : vector<16x32xf32>
    %39 = tpu.matmul %38, %12, %cst_22 {dimension_numbers = #tpu.dot_dimension_numbers<[1], [0], [0], [1], [0, 0, 1, 1], [], []>} : vector<16x32xf32>, vector<32x32xf32>, vector<16x32xf32> -> vector<16x32xf32>
    %40 = vector.broadcast %3 : vector<1x32xf32> to vector<16x32xf32>
    %41 = arith.addf %39, %40 : vector<16x32xf32>
    %cst_23 = arith.constant dense<0.000000e+00> : vector<16x32xf32>
    %42 = tpu.matmul %38, %13, %cst_23 {dimension_numbers = #tpu.dot_dimension_numbers<[1], [0], [0], [1], [0, 0, 1, 1], [], []>} : vector<16x32xf32>, vector<32x32xf32>, vector<16x32xf32> -> vector<16x32xf32>
    %43 = vector.broadcast %4 : vector<1x32xf32> to vector<16x32xf32>
    %44 = arith.addf %42, %43 : vector<16x32xf32>
    %cst_24 = arith.constant dense<0.000000e+00> : vector<16x32xf32>
    %45 = tpu.matmul %38, %14, %cst_24 {dimension_numbers = #tpu.dot_dimension_numbers<[1], [0], [0], [1], [0, 0, 1, 1], [], []>} : vector<16x32xf32>, vector<32x32xf32>, vector<16x32xf32> -> vector<16x32xf32>
    %46 = vector.broadcast %5 : vector<1x32xf32> to vector<16x32xf32>
    %47 = arith.addf %45, %46 : vector<16x32xf32>
    %cst_25 = arith.constant dense<0.000000e+00> : vector<64x32xf32>
    %48 = tpu.matmul %11, %44, %cst_25 {dimension_numbers = #tpu.dot_dimension_numbers<[1], [0], [0], [1], [0, 0, 1, 1], [], []>} : vector<64x16xf32>, vector<16x32xf32>, vector<64x32xf32> -> vector<64x32xf32>
    %49 = arith.mulf %48, %10 : vector<64x32xf32>
    %cst_26 = arith.constant dense<0.000000e+00> : vector<64x32xf32>
    %50 = tpu.matmul %11, %47, %cst_26 {dimension_numbers = #tpu.dot_dimension_numbers<[1], [0], [0], [1], [0, 0, 1, 1], [], []>} : vector<64x16xf32>, vector<16x32xf32>, vector<64x32xf32> -> vector<64x32xf32>
    %51 = arith.mulf %50, %10 : vector<64x32xf32>
    %cst_27 = arith.constant dense<0.000000e+00> : vector<16x64xf32>
    %52 = tpu.matmul %41, %49, %cst_27 {dimension_numbers = #tpu.dot_dimension_numbers<[1], [1], [0], [0], [0, 0, 1, 0], [], []>} : vector<16x32xf32>, vector<64x32xf32>, vector<16x64xf32> -> vector<16x64xf32>
    %53 = arith.addf %52, %8 : vector<16x64xf32>
    %cst_28 = arith.constant dense<0xFF800000> : vector<16xf32>
    %54 = vector.multi_reduction <maximumf>, %53, %cst_28 [1] : vector<16x64xf32> to vector<16xf32>
    %55 = vector.shape_cast %54 : vector<16xf32> to vector<16x1xf32>
    %56 = vector.broadcast %55 : vector<16x1xf32> to vector<16x64xf32>
    %57 = arith.subf %53, %56 : vector<16x64xf32>
    %58 = math.exp %57 : vector<16x64xf32>
    %cst_29 = arith.constant dense<0.000000e+00> : vector<16x64xf32>
    %59 = tpu.matmul %58, %9, %cst_29 {dimension_numbers = #tpu.dot_dimension_numbers<[1], [0], [0], [1], [0, 0, 1, 1], [], []>} : vector<16x64xf32>, vector<64x64xf32>, vector<16x64xf32> -> vector<16x64xf32>
    %cst_30 = arith.constant 1.000000e-30 : f32
    %60 = vector.broadcast %cst_30 : f32 to vector<16x64xf32>
    %61 = arith.addf %59, %60 : vector<16x64xf32>
    %62 = tpu.reciprocal %61 {approx = true} : vector<16x64xf32> -> vector<16x64xf32>
    %63 = arith.mulf %58, %62 : vector<16x64xf32>
    %cst_31 = arith.constant dense<0.000000e+00> : vector<16x32xf32>
    %64 = tpu.matmul %63, %51, %cst_31 {dimension_numbers = #tpu.dot_dimension_numbers<[1], [0], [0], [1], [0, 0, 1, 1], [], []>} : vector<16x64xf32>, vector<64x32xf32>, vector<16x32xf32> -> vector<16x32xf32>
    %65 = arith.addf %0, %64 : vector<16x32xf32>
    %cst_32 = arith.constant dense<0.000000e+00> : vector<16xf32>
    %66 = vector.multi_reduction <add>, %65, %cst_32 [1] : vector<16x32xf32> to vector<16xf32>
    %67 = vector.shape_cast %66 : vector<16xf32> to vector<16x1xf32>
    %cst_33 = arith.constant 3.200000e+01 : f32
    %68 = vector.broadcast %cst_33 : f32 to vector<16x1xf32>
    %69 = arith.divf %67, %68 : vector<16x1xf32>
    %70 = vector.broadcast %69 : vector<16x1xf32> to vector<16x32xf32>
    %71 = arith.subf %65, %70 : vector<16x32xf32>
    %72 = arith.mulf %71, %71 : vector<16x32xf32>
    %cst_34 = arith.constant dense<0.000000e+00> : vector<16xf32>
    %73 = vector.multi_reduction <add>, %72, %cst_34 [1] : vector<16x32xf32> to vector<16xf32>
    %74 = vector.shape_cast %73 : vector<16xf32> to vector<16x1xf32>
    %cst_35 = arith.constant 3.200000e+01 : f32
    %75 = vector.broadcast %cst_35 : f32 to vector<16x1xf32>
    %76 = arith.divf %74, %75 : vector<16x1xf32>
    %77 = vector.broadcast %69 : vector<16x1xf32> to vector<16x32xf32>
    %78 = arith.subf %65, %77 : vector<16x32xf32>
    %cst_36 = arith.constant 9.99999974E-6 : f32
    %79 = vector.broadcast %cst_36 : f32 to vector<16x1xf32>
    %80 = arith.addf %76, %79 : vector<16x1xf32>
    %81 = math.rsqrt %80 : vector<16x1xf32>
    %82 = vector.broadcast %81 : vector<16x1xf32> to vector<16x32xf32>
    %83 = arith.mulf %78, %82 : vector<16x32xf32>
    %84 = vector.broadcast %1 : vector<1x32xf32> to vector<16x32xf32>
    %85 = arith.mulf %83, %84 : vector<16x32xf32>
    %86 = vector.broadcast %2 : vector<1x32xf32> to vector<16x32xf32>
    %87 = arith.addf %85, %86 : vector<16x32xf32>
    %cst_37 = arith.constant dense<0.000000e+00> : vector<16x128xf32>
    %88 = tpu.matmul %87, %15, %cst_37 {dimension_numbers = #tpu.dot_dimension_numbers<[1], [0], [0], [1], [0, 0, 1, 1], [], []>} : vector<16x32xf32>, vector<32x128xf32>, vector<16x128xf32> -> vector<16x128xf32>
    %89 = vector.broadcast %7 : vector<1x128xf32> to vector<16x128xf32>
    %90 = arith.addf %88, %89 : vector<16x128xf32>
    %cst_38 = arith.constant 5.000000e-01 : f32
    %91 = vector.broadcast %cst_38 : f32 to vector<16x128xf32>
    %92 = arith.mulf %91, %90 : vector<16x128xf32>
    %cst_39 = arith.constant 0.707106769 : f32
    %93 = vector.broadcast %cst_39 : f32 to vector<16x128xf32>
    %94 = arith.mulf %90, %93 : vector<16x128xf32>
    %95 = math.erf %94 : vector<16x128xf32>
    %cst_40 = arith.constant 1.000000e+00 : f32
    %96 = vector.broadcast %cst_40 : f32 to vector<16x128xf32>
    %97 = arith.addf %96, %95 : vector<16x128xf32>
    %98 = arith.mulf %92, %97 : vector<16x128xf32>
    %cst_41 = arith.constant dense<0.000000e+00> : vector<16x32xf32>
    %99 = tpu.matmul %98, %16, %cst_41 {dimension_numbers = #tpu.dot_dimension_numbers<[1], [1], [0], [0], [0, 0, 1, 0], [], []>} : vector<16x128xf32>, vector<32x128xf32>, vector<16x32xf32> -> vector<16x32xf32>
    %100 = vector.broadcast %6 : vector<1x32xf32> to vector<16x32xf32>
    %101 = arith.addf %99, %100 : vector<16x32xf32>
    %102 = arith.addf %65, %101 : vector<16x32xf32>
    %c0_42 = arith.constant 0 : index
    %c0_43 = arith.constant 0 : index
    %103 = vector.load %arg2[%c0_42, %c0_43] : memref<16x32xf32, #tpu.memory_space<vmem>>, vector<16x32xf32>
    tpu.vector_store %arg2[%c0_42, %c0_43], %102 {strides = array<i32>} : memref<16x32xf32, #tpu.memory_space<vmem>>, vector<16x32xf32>,
    return
  }
}

</mosaic_0001>

<llo_original>
// kernel: gpt_block.1
$region0: #{gpt_block.1}
  #allocation0 [shape = 'u32[]', space=smem, size = 0x4, offset = 0x4, fixed_abs, tag = 'smem constant byte address 0x4 - core index']
  #allocation1 [shape = 'u32[144,128]{1,0:T(1,128)}', space=vmem, size = 0x12000, scoped, tag = 'internal scratch']
  %s0 = inlined_call_operand.hbm [shape: f32[16,32], index: 0, kind: input, shape index: {}]
  %s1 = inlined_call_operand.hbm [shape: f32[376,128], index: 1, kind: input, shape index: {}]
  %s2 = inlined_call_operand.hbm [shape: f32[16,32], index: 2, kind: output, shape index: {}]
  %s3 = sld [smem:[#allocation0]]
  $region26: #{gpt_block.1} parent=0
    _
  %s5 = ssub.s32 1, %s3
  %s6 = scalar_select 0, %s5, %s3
  $region1: #{gpt_block.1} parent=0
    #allocation2 [shape = 'u8[8192]{0}', space=vmem, size = 0x2000, scoped, tag = 'input window, operand 0, single buffered']
    #allocation3 [shape = 's32[1]{0}', space=sflag, size = 0x4, scoped, tag = 'scoped memory for gpt_block.1']
    #allocation4 [shape = 's32[1]{0}', space=sflag, size = 0x4, scoped, tag = 'scoped memory for gpt_block.1']
    #allocation5 [shape = 'u8[192512]{0}', space=vmem, size = 0x2f000, scoped, tag = 'input window, operand 1, single buffered']
    #allocation6 [shape = 's32[1]{0}', space=sflag, size = 0x4, scoped, tag = 'scoped memory for gpt_block.1']
    #allocation7 [shape = 'u8[8192]{0}', space=vmem, size = 0x2000, scoped, tag = 'output window, operand 0, single buffered']
    %7 = vsyncpa [#allocation3], 0
    %8 = vsyncpa [#allocation6], 0
    %9 = vsyncpa [#allocation4], 0
    // Predicated region
    $region2: #{gpt_block.1} parent=1 // pred_check
      _
    $region3: #{gpt_block.1} parent=1 // pred_check_branch
      %11 = sbr.rel (0) target = $region5
    $region4: #{gpt_block.1} parent=1 // pred_region
      %s13 = ssub.s32 256, 256
      %14 = vsyncadd [#allocation3], %s13
      %s15 = sshll.u32 [#allocation2], 4
      %s16 = int_to_ptr.vmem [resolvable:$true] %s15
      %21 = dma.hbm_to_vmem [thread:$0]  %s0, 256, %s16, [#allocation3], 128, 128, 8
    $region5: #{gpt_block.1} parent=1 // pred_fallthru
      _
    // Predicated region
    $region6: #{gpt_block.1} parent=1 // pred_check
      _
    $region7: #{gpt_block.1} parent=1 // pred_check_branch
      %23 = sbr.rel (0) target = $region9
    $region8: #{gpt_block.1} parent=1 // pred_region
      %s25 = ssub.s32 6016, 6016
      %26 = vsyncadd [#allocation6], %s25
      %s27 = sshll.u32 [#allocation5], 4
      %s28 = int_to_ptr.vmem [resolvable:$true] %s27
      %33 = dma.hbm_to_vmem [thread:$0]  %s1, 6016, %s28, [#allocation6], 128, 128, 8
    $region9: #{gpt_block.1} parent=1 // pred_fallthru
      _
    // Predicated region
    $region10: #{gpt_block.1} parent=1 // pred_check
      _
    $region11: #{gpt_block.1} parent=1 // pred_check_branch
      %35 = sbr.rel (0) target = $region13
    $region12: #{gpt_block.1} parent=1 // pred_region
      %36 = dma.done [#allocation3], 256
    $region13: #{gpt_block.1} parent=1 // pred_fallthru
      _
    // Predicated region
    $region14: #{gpt_block.1} parent=1 // pred_check
      _
    $region15: #{gpt_block.1} parent=1 // pred_check_branch
      %38 = sbr.rel (0) target = $region17
    $region16: #{gpt_block.1} parent=1 // pred_region
      %39 = dma.done [#allocation6], 6016
    $region17: #{gpt_block.1} parent=1 // pred_fallthru
      _
    %v40 = vld [vmem:[#allocation2] sm:$0xff]
    %v41 = vld [vmem:[#allocation2 + $0x8] sm:$0xff]
    %v42 = vld [vmem:[#allocation5] sm:$0x1]
    %v43 = vld [vmem:[#allocation5 + $0x1] sm:$0x1]
    %v44 = vld [vmem:[#allocation5 + $0x2] sm:$0x1]
    %v45 = vld [vmem:[#allocation5 + $0x3] sm:$0x1]
    %v46 = vld [vmem:[#allocation5 + $0x4] sm:$0x1]
    %v47 = vld [vmem:[#allocation5 + $0x5] sm:$0x1]
    %v48 = vld [vmem:[#allocation5 + $0x6] sm:$0x1]
    %v49 = vld [vmem:[#allocation5 + $0x8] sm:$0xff]
    %v50 = vld [vmem:[#allocation5 + $0x10] sm:$0xff]
    %v51 = vld [vmem:[#allocation5 + $0x18] sm:$0xff]
    %v52 = vld [vmem:[#allocation5 + $0x20] sm:$0xff]
    %v53 = vld [vmem:[#allocation5 + $0x28] sm:$0xff]
    %v54 = vld [vmem:[#allocation5 + $0x30] sm:$0xff]
    %v55 = vld [vmem:[#allocation5 + $0x38] sm:$0xff]
    %v56 = vld [vmem:[#allocation5 + $0x40] sm:$0xff]
    %v57 = vld [vmem:[#allocation5 + $0x48] sm:$0xff]
    %v58 = vld [vmem:[#allocation5 + $0x50] sm:$0xff]
    %v59 = vld [vmem:[#allocation5 + $0x58] sm:$0xff]
    %v60 = vld [vmem:[#allocation5 + $0x60] sm:$0xff]
    %v61 = vld [vmem:[#allocation5 + $0x68] sm:$0xff]
    %v62 = vld [vmem:[#allocation5 + $0x70] sm:$0xff]
    %v63 = vld [vmem:[#allocation5 + $0x78] sm:$0xff]
    %v64 = vld [vmem:[#allocation5 + $0x80] sm:$0xff]
    %v65 = vld [vmem:[#allocation5 + $0x88] sm:$0xff]
    %v66 = vld [vmem:[#allocation5 + $0x90] sm:$0xff]
    %v67 = vld [vmem:[#allocation5 + $0x98] sm:$0xff]
    %v68 = vld [vmem:[#allocation5 + $0xa0] sm:$0xff]
    %v69 = vld [vmem:[#allocation5 + $0xa8] sm:$0xff]
    %v70 = vld [vmem:[#allocation5 + $0xb0] sm:$0xff]
    %v71 = vld [vmem:[#allocation5 + $0xb8] sm:$0xff]
    %v72 = vld [vmem:[#allocation5 + $0xc0] sm:$0xff]
    %v73 = vld [vmem:[#allocation5 + $0xc8] sm:$0xff]
    %v74 = vld [vmem:[#allocation5 + $0xd0] sm:$0xff]
    %v75 = vld [vmem:[#allocation5 + $0xd8] sm:$0xff]
    %v76 = vld [vmem:[#allocation5 + $0xe0] sm:$0xff]
    %v77 = vld [vmem:[#allocation5 + $0xe8] sm:$0xff]
    %v78 = vld [vmem:[#allocation5 + $0xf0] sm:$0xff]
    %v79 = vld [vmem:[#allocation5 + $0xf8] sm:$0xff]
    %v80 = vld [vmem:[#allocation5 + $0x100] sm:$0xff]
    %v81 = vld [vmem:[#allocation5 + $0x108] sm:$0xff]
    %v82 = vld [vmem:[#allocation5 + $0x110] sm:$0xff]
    %v83 = vld [vmem:[#allocation5 + $0x118] sm:$0xff]
    %v84 = vld [vmem:[#allocation5 + $0x120] sm:$0xff]
    %v85 = vld [vmem:[#allocation5 + $0x128] sm:$0xff]
    %v86 = vld [vmem:[#allocation5 + $0x130] sm:$0xff]
    %v87 = vld [vmem:[#allocation5 + $0x138] sm:$0xff]
    %v88 = vld [vmem:[#allocation5 + $0x140] sm:$0xff]
    %v89 = vld [vmem:[#allocation5 + $0x148] sm:$0xff]
    %v90 = vld [vmem:[#allocation5 + $0x150] sm:$0xff]
    %v91 = vld [vmem:[#allocation5 + $0x158] sm:$0xff]
    %v92 = vld [vmem:[#allocation5 + $0x160] sm:$0xff]
    %v93 = vld [vmem:[#allocation5 + $0x168] sm:$0xff]
    %v94 = vld [vmem:[#allocation5 + $0x170] sm:$0xff]
    %vm95 = vcmask 261120
    %v96 = vsel %vm95, %v40, 0.0
    %97 = vadd.xlane.f32.xlu0 %v96
    %v98 = vpop.xlane.xlu0 %97
    %v99 = vsel %vm95, %v41, 0.0
    %100 = vadd.xlane.f32.xlu0 %v99
    %v101 = vpop.xlane.xlu0 %100
    %v102 = vrcp.pop 32.0
    %v103 = vmul.f32 %v98, %v102
    %v104 = vmul.f32 %v101, %v102
    %v105 = vsub.f32 %v40, %v103
    %v106 = vsub.f32 %v41, %v104
    %v107 = vmul.f32 %v105, %v105
    %v108 = vmul.f32 %v106, %v106
    %v109 = vsel %vm95, %v107, 0.0
    %110 = vadd.xlane.f32.xlu0 %v109
    %v111 = vpop.xlane.xlu0 %110
    %v112 = vsel %vm95, %v108, 0.0
    %113 = vadd.xlane.f32.xlu0 %v112
    %v114 = vpop.xlane.xlu0 %113
    %v115 = vmul.f32 %v111, %v102
    %v116 = vmul.f32 %v114, %v102
    %v117 = vadd.f32 %v115, 1e-05
    %v118 = vadd.f32 %v116, 1e-05
    %v119 = vrsqrt.pop %v117
    %v120 = vrsqrt.pop %v118
    %v121 = vmul.f32 %v105, %v119
    %v122 = vmul.f32 %v106, %v120
    %v123 = vlaneseq
    %v124 = vshrl.u32 %v123, 7
    %v125 = vsub.s32 0, %v124
    %v126 = vrot.slane %v42, %v125
    %v127 = vmul.f32 %v121, %v126
    %v128 = vmul.f32 %v122, %v126
    %v129 = vlaneseq
    %v130 = vshrl.u32 %v129, 7
    %v131 = vsub.s32 0, %v130
    %v132 = vrot.slane %v43, %v131
    %v133 = vadd.f32 %v127, %v132
    %v134 = vadd.f32 %v128, %v132
    %v135 = vlaneseq
    %v136 = vshrl.u32 %v135, 7
    %v137 = vsub.s32 0, %v136
    %v138 = vrot.slane %v44, %v137
    %v140 = vsel %vm95, %v133, 0
    %v143 = vsel %vm95, %v134, 0
    %145 = vmatprep.subr.mxu0 0.0
    %146 = vmatpush1.msra.mxu0 0.0
    %147 = vmatprep.subr.mxu0 0.0
    %148 = vmatpush1.msra.mxu0 0.0
    %149 = vmatprep.subr.mxu0 0.0
    %150 = vmatpush1.msra.mxu0 0.0
    %151 = vmatprep.subr.mxu0 0.0
    %152 = vmatpush1.msra.mxu0 0.0
    %153 = vmatprep.subr.mxu0 0.0
    %154 = vmatpush1.msra.mxu0 0.0
    %155 = vmatprep.subr.mxu0 0.0
    %156 = vmatpush1.msra.mxu0 0.0
    %157 = vmatprep.subr.mxu0 0.0
    %158 = vmatpush1.msra.mxu0 0.0
    %159 = vmatprep.subr.mxu0 0.0
    %160 = vmatpush1.msra.mxu0 0.0
    %161 = vmatprep.subr.mxu0 0.0
    %162 = vmatpush1.msra.mxu0 0.0
    %163 = vmatprep.subr.mxu0 0.0
    %164 = vmatpush1.msra.mxu0 0.0
    %165 = vmatprep.subr.mxu0 0.0
    %166 = vmatpush1.msra.mxu0 0.0
    %167 = vmatprep.subr.mxu0 0.0
    %168 = vmatpush1.msra.mxu0 0.0
    %169 = vmatprep.subr.mxu0 0.0
    %170 = vmatpush1.msra.mxu0 %v78
    %171 = vmatprep.subr.mxu0 0.0
    %172 = vmatpush1.msra.mxu0 %v77
    %173 = vmatprep.subr.mxu0 0.0
    %174 = vmatpush1.msra.mxu0 %v76
    %175 = vmatprep.subr.mxu0 0.0
    %176 = vmatpush1.msra.mxu0 %v75
    %177 = vmatprep.subr.mxu0 0.0
    %178 = vmatpush2.msra.mxu0 0.0
    %179 = vmatprep.subr.mxu0 0.0
    %180 = vmatpush2.msra.mxu0 0.0
    %181 = vmatprep.subr.mxu0 0.0
    %182 = vmatpush2.msra.mxu0 0.0
    %183 = vmatprep.subr.mxu0 0.0
    %184 = vmatpush2.msra.mxu0 0.0
    %185 = vmatprep.subr.mxu0 0.0
    %186 = vmatpush2.msra.mxu0 0.0
    %187 = vmatprep.subr.mxu0 0.0
    %188 = vmatpush2.msra.mxu0 0.0
    %189 = vmatprep.subr.mxu0 0.0
    %190 = vmatpush2.msra.mxu0 0.0
    %191 = vmatprep.subr.mxu0 0.0
    %192 = vmatpush2.msra.mxu0 0.0
    %193 = vmatprep.subr.mxu0 0.0
    %194 = vmatpush2.msra.mxu0 0.0
    %195 = vmatprep.subr.mxu0 0.0
    %196 = vmatpush2.msra.mxu0 0.0
    %197 = vmatprep.subr.mxu0 0.0
    %198 = vmatpush2.msra.mxu0 0.0
    %199 = vmatprep.subr.mxu0 0.0
    %200 = vmatpush2.msra.mxu0 0.0
    %201 = vmatprep.subr.mxu0 0.0
    %202 = vmatpush2.msra.mxu0 0.0
    %203 = vmatprep.subr.mxu0 0.0
    %204 = vmatpush2.msra.mxu0 0.0
    %205 = vmatprep.subr.mxu0 0.0
    %206 = vmatpush2.msra.mxu0 0.0
    %207 = vmatprep.subr.mxu0 0.0
    %208 = vmatpush2.msra.mxu0 0.0
    %209 = vmatprep.mubr.f32.mxu0 0.0
    %210 = vmatmul.mubr.f32.gmra.mxu0 %v140
    %v211 = vpop.f32.mrf.mxu0
    %v212 = vadd.f32 %v138, %v211
    %v213 = vpop.f32.mrf.mxu0
    %214 = vmatprep.mubr.f32.mxu0 0.0
    %215 = vmatmul.mubr.f32.gmra.mxu0 %v143
    %v216 = vpop.f32.mrf.mxu0
    %v217 = vadd.f32 %v138, %v216
    %v218 = vpop.f32.mrf.mxu0
    %219 = vdwg.mxu0
    %v220 = vlaneseq
    %v221 = vshrl.u32 %v220, 7
    %v222 = vsub.s32 0, %v221
    %v223 = vrot.slane %v45, %v222
    %224 = vmatprep.subr.mxu0 0.0
    %225 = vmatpush1.msra.mxu0 0.0
    %226 = vmatprep.subr.mxu0 0.0
    %227 = vmatpush1.msra.mxu0 0.0
    %228 = vmatprep.subr.mxu0 0.0
    %229 = vmatpush1.msra.mxu0 0.0
    %230 = vmatprep.subr.mxu0 0.0
    %231 = vmatpush1.msra.mxu0 0.0
    %232 = vmatprep.subr.mxu0 0.0
    %233 = vmatpush1.msra.mxu0 0.0
    %234 = vmatprep.subr.mxu0 0.0
    %235 = vmatpush1.msra.mxu0 0.0
    %236 = vmatprep.subr.mxu0 0.0
    %237 = vmatpush1.msra.mxu0 0.0
    %238 = vmatprep.subr.mxu0 0.0
    %239 = vmatpush1.msra.mxu0 0.0
    %240 = vmatprep.subr.mxu0 0.0
    %241 = vmatpush1.msra.mxu0 0.0
    %242 = vmatprep.subr.mxu0 0.0
    %243 = vmatpush1.msra.mxu0 0.0
    %244 = vmatprep.subr.mxu0 0.0
    %245 = vmatpush1.msra.mxu0 0.0
    %246 = vmatprep.subr.mxu0 0.0
    %247 = vmatpush1.msra.mxu0 0.0
    %248 = vmatprep.subr.mxu0 0.0
    %249 = vmatpush1.msra.mxu0 %v82
    %250 = vmatprep.subr.mxu0 0.0
    %251 = vmatpush1.msra.mxu0 %v81
    %252 = vmatprep.subr.mxu0 0.0
    %253 = vmatpush1.msra.mxu0 %v80
    %254 = vmatprep.subr.mxu0 0.0
    %255 = vmatpush1.msra.mxu0 %v79
    %256 = vmatprep.subr.mxu0 0.0
    %257 = vmatpush2.msra.mxu0 0.0
    %258 = vmatprep.subr.mxu0 0.0
    %259 = vmatpush2.msra.mxu0 0.0
    %260 = vmatprep.subr.mxu0 0.0
    %261 = vmatpush2.msra.mxu0 0.0
    %262 = vmatprep.subr.mxu0 0.0
    %263 = vmatpush2.msra.mxu0 0.0
    %264 = vmatprep.subr.mxu0 0.0
    %265 = vmatpush2.msra.mxu0 0.0
    %266 = vmatprep.subr.mxu0 0.0
    %267 = vmatpush2.msra.mxu0 0.0
    %268 = vmatprep.subr.mxu0 0.0
    %269 = vmatpush2.msra.mxu0 0.0
    %270 = vmatprep.subr.mxu0 0.0
    %271 = vmatpush2.msra.mxu0 0.0
    %272 = vmatprep.subr.mxu0 0.0
    %273 = vmatpush2.msra.mxu0 0.0
    %274 = vmatprep.subr.mxu0 0.0
    %275 = vmatpush2.msra.mxu0 0.0
    %276 = vmatprep.subr.mxu0 0.0
    %277 = vmatpush2.msra.mxu0 0.0
    %278 = vmatprep.subr.mxu0 0.0
    %279 = vmatpush2.msra.mxu0 0.0
    %280 = vmatprep.subr.mxu0 0.0
    %281 = vmatpush2.msra.mxu0 0.0
    %282 = vmatprep.subr.mxu0 0.0
    %283 = vmatpush2.msra.mxu0 0.0
    %284 = vmatprep.subr.mxu0 0.0
    %285 = vmatpush2.msra.mxu0 0.0
    %286 = vmatprep.subr.mxu0 0.0
    %287 = vmatpush2.msra.mxu0 0.0
    %288 = vmatprep.mubr.f32.mxu0 0.0
    %289 = vmatmul.mubr.f32.gmra.mxu0 %v140
    %v290 = vpop.f32.mrf.mxu0
    %v291 = vadd.f32 %v223, %v290
    %v292 = vpop.f32.mrf.mxu0
    %293 = vmatprep.mubr.f32.mxu0 0.0
    %294 = vmatmul.mubr.f32.gmra.mxu0 %v143
    %v295 = vpop.f32.mrf.mxu0
    %v296 = vadd.f32 %v223, %v295
    %v297 = vpop.f32.mrf.mxu0
    %298 = vdwg.mxu0
    %v299 = vlaneseq
    %v300 = vshrl.u32 %v299, 7
    %v301 = vsub.s32 0, %v300
    %v302 = vrot.slane %v46, %v301
    %303 = vmatprep.subr.mxu0 0.0
    %304 = vmatpush1.msra.mxu0 0.0
    %305 = vmatprep.subr.mxu0 0.0
    %306 = vmatpush1.msra.mxu0 0.0
    %307 = vmatprep.subr.mxu0 0.0
    %308 = vmatpush1.msra.mxu0 0.0
    %309 = vmatprep.subr.mxu0 0.0
    %310 = vmatpush1.msra.mxu0 0.0
    %311 = vmatprep.subr.mxu0 0.0
    %312 = vmatpush1.msra.mxu0 0.0
    %313 = vmatprep.subr.mxu0 0.0
    %314 = vmatpush1.msra.mxu0 0.0
    %315 = vmatprep.subr.mxu0 0.0
    %316 = vmatpush1.msra.mxu0 0.0
    %317 = vmatprep.subr.mxu0 0.0
    %318 = vmatpush1.msra.mxu0 0.0
    %319 = vmatprep.subr.mxu0 0.0
    %320 = vmatpush1.msra.mxu0 0.0
    %321 = vmatprep.subr.mxu0 0.0
    %322 = vmatpush1.msra.mxu0 0.0
    %323 = vmatprep.subr.mxu0 0.0
    %324 = vmatpush1.msra.mxu0 0.0
    %325 = vmatprep.subr.mxu0 0.0
    %326 = vmatpush1.msra.mxu0 0.0
    %327 = vmatprep.subr.mxu0 0.0
    %328 = vmatpush1.msra.mxu0 %v86
    %329 = vmatprep.subr.mxu0 0.0
    %330 = vmatpush1.msra.mxu0 %v85
    %331 = vmatprep.subr.mxu0 0.0
    %332 = vmatpush1.msra.mxu0 %v84
    %333 = vmatprep.subr.mxu0 0.0
    %334 = vmatpush1.msra.mxu0 %v83
    %335 = vmatprep.subr.mxu0 0.0
    %336 = vmatpush2.msra.mxu0 0.0
    %337 = vmatprep.subr.mxu0 0.0
    %338 = vmatpush2.msra.mxu0 0.0
    %339 = vmatprep.subr.mxu0 0.0
    %340 = vmatpush2.msra.mxu0 0.0
    %341 = vmatprep.subr.mxu0 0.0
    %342 = vmatpush2.msra.mxu0 0.0
    %343 = vmatprep.subr.mxu0 0.0
    %344 = vmatpush2.msra.mxu0 0.0
    %345 = vmatprep.subr.mxu0 0.0
    %346 = vmatpush2.msra.mxu0 0.0
    %347 = vmatprep.subr.mxu0 0.0
    %348 = vmatpush2.msra.mxu0 0.0
    %349 = vmatprep.subr.mxu0 0.0
    %350 = vmatpush2.msra.mxu0 0.0
    %351 = vmatprep.subr.mxu0 0.0
    %352 = vmatpush2.msra.mxu0 0.0
    %353 = vmatprep.subr.mxu0 0.0
    %354 = vmatpush2.msra.mxu0 0.0
    %355 = vmatprep.subr.mxu0 0.0
    %356 = vmatpush2.msra.mxu0 0.0
    %357 = vmatprep.subr.mxu0 0.0
    %358 = vmatpush2.msra.mxu0 0.0
    %359 = vmatprep.subr.mxu0 0.0
    %360 = vmatpush2.msra.mxu0 0.0
    %361 = vmatprep.subr.mxu0 0.0
    %362 = vmatpush2.msra.mxu0 0.0
    %363 = vmatprep.subr.mxu0 0.0
    %364 = vmatpush2.msra.mxu0 0.0
    %365 = vmatprep.subr.mxu0 0.0
    %366 = vmatpush2.msra.mxu0 0.0
    %367 = vmatprep.mubr.f32.mxu0 0.0
    %368 = vmatmul.mubr.f32.gmra.mxu0 %v140
    %v369 = vpop.f32.mrf.mxu0
    %v370 = vadd.f32 %v302, %v369
    %v371 = vpop.f32.mrf.mxu0
    %372 = vmatprep.mubr.f32.mxu0 0.0
    %373 = vmatmul.mubr.f32.gmra.mxu0 %v143
    %v374 = vpop.f32.mrf.mxu0
    %v375 = vadd.f32 %v302, %v374
    %v376 = vpop.f32.mrf.mxu0
    %377 = vdwg.mxu0
    %vm378 = vcmask 130048
    %v380 = vsel %vm378, %v67, 0
    %v383 = vsel %vm378, %v68, 0
    %v386 = vsel %vm378, %v69, 0
    %v389 = vsel %vm378, %v70, 0
    %v392 = vsel %vm378, %v71, 0
    %v395 = vsel %vm378, %v72, 0
    %v398 = vsel %vm378, %v73, 0
    %v401 = vsel %vm378, %v74, 0
    %403 = vmatprep.subr.mxu0 0.0
    %404 = vmatpush1.msra.mxu0 0.0
    %405 = vmatprep.subr.mxu0 0.0
    %406 = vmatpush1.msra.mxu0 0.0
    %407 = vmatprep.subr.mxu0 0.0
    %408 = vmatpush1.msra.mxu0 0.0
    %409 = vmatprep.subr.mxu0 0.0
    %410 = vmatpush1.msra.mxu0 0.0
    %411 = vmatprep.subr.mxu0 0.0
    %412 = vmatpush1.msra.mxu0 0.0
    %413 = vmatprep.subr.mxu0 0.0
    %414 = vmatpush1.msra.mxu0 0.0
    %415 = vmatprep.subr.mxu0 0.0
    %416 = vmatpush1.msra.mxu0 0.0
    %417 = vmatprep.subr.mxu0 0.0
    %418 = vmatpush1.msra.mxu0 0.0
    %419 = vmatprep.subr.mxu0 0.0
    %420 = vmatpush1.msra.mxu0 0.0
    %421 = vmatprep.subr.mxu0 0.0
    %422 = vmatpush1.msra.mxu0 0.0
    %423 = vmatprep.subr.mxu0 0.0
    %424 = vmatpush1.msra.mxu0 0.0
    %425 = vmatprep.subr.mxu0 0.0
    %426 = vmatpush1.msra.mxu0 0.0
    %427 = vmatprep.subr.mxu0 0.0
    %428 = vmatpush1.msra.mxu0 0.0
    %429 = vmatprep.subr.mxu0 0.0
    %430 = vmatpush1.msra.mxu0 0.0
    %431 = vmatprep.subr.mxu0 0.0
    %432 = vmatpush1.msra.mxu0 %v296
    %433 = vmatprep.subr.mxu0 0.0
    %434 = vmatpush1.msra.mxu0 %v291
    %435 = vmatprep.subr.mxu0 0.0
    %436 = vmatpush2.msra.mxu0 0.0
    %437 = vmatprep.subr.mxu0 0.0
    %438 = vmatpush2.msra.mxu0 0.0
    %439 = vmatprep.subr.mxu0 0.0
    %440 = vmatpush2.msra.mxu0 0.0
    %441 = vmatprep.subr.mxu0 0.0
    %442 = vmatpush2.msra.mxu0 0.0
    %443 = vmatprep.subr.mxu0 0.0
    %444 = vmatpush2.msra.mxu0 0.0
    %445 = vmatprep.subr.mxu0 0.0
    %446 = vmatpush2.msra.mxu0 0.0
    %447 = vmatprep.subr.mxu0 0.0
    %448 = vmatpush2.msra.mxu0 0.0
    %449 = vmatprep.subr.mxu0 0.0
    %450 = vmatpush2.msra.mxu0 0.0
    %451 = vmatprep.subr.mxu0 0.0
    %452 = vmatpush2.msra.mxu0 0.0
    %453 = vmatprep.subr.mxu0 0.0
    %454 = vmatpush2.msra.mxu0 0.0
    %455 = vmatprep.subr.mxu0 0.0
    %456 = vmatpush2.msra.mxu0 0.0
    %457 = vmatprep.subr.mxu0 0.0
    %458 = vmatpush2.msra.mxu0 0.0
    %459 = vmatprep.subr.mxu0 0.0
    %460 = vmatpush2.msra.mxu0 0.0
    %461 = vmatprep.subr.mxu0 0.0
    %462 = vmatpush2.msra.mxu0 0.0
    %463 = vmatprep.subr.mxu0 0.0
    %464 = vmatpush2.msra.mxu0 0.0
    %465 = vmatprep.subr.mxu0 0.0
    %466 = vmatpush2.msra.mxu0 0.0
    %467 = vmatprep.mubr.f32.mxu0 0.0
    %468 = vmatmul.mubr.f32.gmra.mxu0 %v380
    %v469 = vpop.f32.mrf.mxu0
    %v470 = vadd.f32 0.0, %v469
    %v471 = vpop.f32.mrf.mxu0
    %472 = vmatprep.mubr.f32.mxu0 0.0
    %473 = vmatmul.mubr.f32.gmra.mxu0 %v383
    %v474 = vpop.f32.mrf.mxu0
    %v475 = vadd.f32 0.0, %v474
    %v476 = vpop.f32.mrf.mxu0
    %477 = vmatprep.mubr.f32.mxu0 0.0
    %478 = vmatmul.mubr.f32.gmra.mxu0 %v386
    %v479 = vpop.f32.mrf.mxu0
    %v480 = vadd.f32 0.0, %v479
    %v481 = vpop.f32.mrf.mxu0
    %482 = vmatprep.mubr.f32.mxu0 0.0
    %483 = vmatmul.mubr.f32.gmra.mxu0 %v389
    %v484 = vpop.f32.mrf.mxu0
    %v485 = vadd.f32 0.0, %v484
    %v486 = vpop.f32.mrf.mxu0
    %487 = vmatprep.mubr.f32.mxu0 0.0
    %488 = vmatmul.mubr.f32.gmra.mxu0 %v392
    %v489 = vpop.f32.mrf.mxu0
    %v490 = vadd.f32 0.0, %v489
    %v491 = vpop.f32.mrf.mxu0
    %492 = vmatprep.mubr.f32.mxu0 0.0
    %493 = vmatmul.mubr.f32.gmra.mxu0 %v395
    %v494 = vpop.f32.mrf.mxu0
    %v495 = vadd.f32 0.0, %v494
    %v496 = vpop.f32.mrf.mxu0
    %497 = vmatprep.mubr.f32.mxu0 0.0
    %498 = vmatmul.mubr.f32.gmra.mxu0 %v398
    %v499 = vpop.f32.mrf.mxu0
    %v500 = vadd.f32 0.0, %v499
    %v501 = vpop.f32.mrf.mxu0
    %502 = vmatprep.mubr.f32.mxu0 0.0
    %503 = vmatmul.mubr.f32.gmra.mxu0 %v401
    %v504 = vpop.f32.mrf.mxu0
    %v505 = vadd.f32 0.0, %v504
    %v506 = vpop.f32.mrf.mxu0
    %507 = vdwg.mxu0
    %v508 = vmul.f32 %v470, %v59
    %v509 = vmul.f32 %v475, %v60
    %v510 = vmul.f32 %v480, %v61
    %v511 = vmul.f32 %v485, %v62
    %v512 = vmul.f32 %v490, %v63
    %v513 = vmul.f32 %v495, %v64
    %v514 = vmul.f32 %v500, %v65
    %v515 = vmul.f32 %v505, %v66
    %516 = vmatprep.subr.mxu0 0.0
    %517 = vmatpush1.msra.mxu0 0.0
    %518 = vmatprep.subr.mxu0 0.0
    %519 = vmatpush1.msra.mxu0 0.0
    %520 = vmatprep.subr.mxu0 0.0
    %521 = vmatpush1.msra.mxu0 0.0
    %522 = vmatprep.subr.mxu0 0.0
    %523 = vmatpush1.msra.mxu0 0.0
    %524 = vmatprep.subr.mxu0 0.0
    %525 = vmatpush1.msra.mxu0 0.0
    %526 = vmatprep.subr.mxu0 0.0
    %527 = vmatpush1.msra.mxu0 0.0
    %528 = vmatprep.subr.mxu0 0.0
    %529 = vmatpush1.msra.mxu0 0.0
    %530 = vmatprep.subr.mxu0 0.0
    %531 = vmatpush1.msra.mxu0 0.0
    %532 = vmatprep.subr.mxu0 0.0
    %533 = vmatpush1.msra.mxu0 0.0
    %534 = vmatprep.subr.mxu0 0.0
    %535 = vmatpush1.msra.mxu0 0.0
    %536 = vmatprep.subr.mxu0 0.0
    %537 = vmatpush1.msra.mxu0 0.0
    %538 = vmatprep.subr.mxu0 0.0
    %539 = vmatpush1.msra.mxu0 0.0
    %540 = vmatprep.subr.mxu0 0.0
    %541 = vmatpush1.msra.mxu0 0.0
    %542 = vmatprep.subr.mxu0 0.0
    %543 = vmatpush1.msra.mxu0 0.0
    %544 = vmatprep.subr.mxu0 0.0
    %545 = vmatpush1.msra.mxu0 %v375
    %546 = vmatprep.subr.mxu0 0.0
    %547 = vmatpush1.msra.mxu0 %v370
    %548 = vmatprep.subr.mxu0 0.0
    %549 = vmatpush2.msra.mxu0 0.0
    %550 = vmatprep.subr.mxu0 0.0
    %551 = vmatpush2.msra.mxu0 0.0
    %552 = vmatprep.subr.mxu0 0.0
    %553 = vmatpush2.msra.mxu0 0.0
    %554 = vmatprep.subr.mxu0 0.0
    %555 = vmatpush2.msra.mxu0 0.0
    %556 = vmatprep.subr.mxu0 0.0
    %557 = vmatpush2.msra.mxu0 0.0
    %558 = vmatprep.subr.mxu0 0.0
    %559 = vmatpush2.msra.mxu0 0.0
    %560 = vmatprep.subr.mxu0 0.0
    %561 = vmatpush2.msra.mxu0 0.0
    %562 = vmatprep.subr.mxu0 0.0
    %563 = vmatpush2.msra.mxu0 0.0
    %564 = vmatprep.subr.mxu0 0.0
    %565 = vmatpush2.msra.mxu0 0.0
    %566 = vmatprep.subr.mxu0 0.0
    %567 = vmatpush2.msra.mxu0 0.0
    %568 = vmatprep.subr.mxu0 0.0
    %569 = vmatpush2.msra.mxu0 0.0
    %570 = vmatprep.subr.mxu0 0.0
    %571 = vmatpush2.msra.mxu0 0.0
    %572 = vmatprep.subr.mxu0 0.0
    %573 = vmatpush2.msra.mxu0 0.0
    %574 = vmatprep.subr.mxu0 0.0
    %575 = vmatpush2.msra.mxu0 0.0
    %576 = vmatprep.subr.mxu0 0.0
    %577 = vmatpush2.msra.mxu0 0.0
    %578 = vmatprep.subr.mxu0 0.0
    %579 = vmatpush2.msra.mxu0 0.0
    %580 = vmatprep.mubr.f32.mxu0 0.0
    %581 = vmatmul.mubr.f32.gmra.mxu0 %v380
    %v582 = vpop.f32.mrf.mxu0
    %v583 = vadd.f32 0.0, %v582
    %v584 = vpop.f32.mrf.mxu0
    %585 = vmatprep.mubr.f32.mxu0 0.0
    %586 = vmatmul.mubr.f32.gmra.mxu0 %v383
    %v587 = vpop.f32.mrf.mxu0
    %v588 = vadd.f32 0.0, %v587
    %v589 = vpop.f32.mrf.mxu0
    %590 = vmatprep.mubr.f32.mxu0 0.0
    %591 = vmatmul.mubr.f32.gmra.mxu0 %v386
    %v592 = vpop.f32.mrf.mxu0
    %v593 = vadd.f32 0.0, %v592
    %v594 = vpop.f32.mrf.mxu0
    %595 = vmatprep.mubr.f32.mxu0 0.0
    %596 = vmatmul.mubr.f32.gmra.mxu0 %v389
    %v597 = vpop.f32.mrf.mxu0
    %v598 = vadd.f32 0.0, %v597
    %v599 = vpop.f32.mrf.mxu0
    %600 = vmatprep.mubr.f32.mxu0 0.0
    %601 = vmatmul.mubr.f32.gmra.mxu0 %v392
    %v602 = vpop.f32.mrf.mxu0
    %v603 = vadd.f32 0.0, %v602
    %v604 = vpop.f32.mrf.mxu0
    %605 = vmatprep.mubr.f32.mxu0 0.0
    %606 = vmatmul.mubr.f32.gmra.mxu0 %v395
    %v607 = vpop.f32.mrf.mxu0
    %v608 = vadd.f32 0.0, %v607
    %v609 = vpop.f32.mrf.mxu0
    %610 = vmatprep.mubr.f32.mxu0 0.0
    %611 = vmatmul.mubr.f32.gmra.mxu0 %v398
    %v612 = vpop.f32.mrf.mxu0
    %v613 = vadd.f32 0.0, %v612
    %v614 = vpop.f32.mrf.mxu0
    %615 = vmatprep.mubr.f32.mxu0 0.0
    %616 = vmatmul.mubr.f32.gmra.mxu0 %v401
    %v617 = vpop.f32.mrf.mxu0
    %v618 = vadd.f32 0.0, %v617
    %v619 = vpop.f32.mrf.mxu0
    %620 = vdwg.mxu0
    %v621 = vmul.f32 %v583, %v59
    %v622 = vmul.f32 %v588, %v60
    %v623 = vmul.f32 %v593, %v61
    %v624 = vmul.f32 %v598, %v62
    %v625 = vmul.f32 %v603, %v63
    %v626 = vmul.f32 %v608, %v64
    %v627 = vmul.f32 %v613, %v65
    %v628 = vmul.f32 %v618, %v66
    %v630 = vsel %vm95, %v212, 0
    %v633 = vsel %vm95, %v217, 0
    %v636 = vsel %vm95, %v508, 0
    %v639 = vsel %vm95, %v509, 0
    %v642 = vsel %vm95, %v510, 0
    %v645 = vsel %vm95, %v511, 0
    %v648 = vsel %vm95, %v512, 0
    %v651 = vsel %vm95, %v513, 0
    %v654 = vsel %vm95, %v514, 0
    %v657 = vsel %vm95, %v515, 0
    %659 = vmatprep.subr.mxu0 0.0
    %660 = vmatpush1.xpose.msra.mxu0 0.0
    %661 = vmatprep.subr.mxu0 0.0
    %662 = vmatpush1.xpose.msra.mxu0 0.0
    %663 = vmatprep.subr.mxu0 0.0
    %664 = vmatpush1.xpose.msra.mxu0 0.0
    %665 = vmatprep.subr.mxu0 0.0
    %666 = vmatpush1.xpose.msra.mxu0 0.0
    %667 = vmatprep.subr.mxu0 0.0
    %668 = vmatpush1.xpose.msra.mxu0 0.0
    %669 = vmatprep.subr.mxu0 0.0
    %670 = vmatpush1.xpose.msra.mxu0 0.0
    %671 = vmatprep.subr.mxu0 0.0
    %672 = vmatpush1.xpose.msra.mxu0 0.0
    %673 = vmatprep.subr.mxu0 0.0
    %674 = vmatpush1.xpose.msra.mxu0 0.0
    %675 = vmatprep.subr.mxu0 0.0
    %676 = vmatpush1.xpose.msra.mxu0 %v657
    %677 = vmatprep.subr.mxu0 0.0
    %678 = vmatpush1.xpose.msra.mxu0 %v654
    %679 = vmatprep.subr.mxu0 0.0
    %680 = vmatpush1.xpose.msra.mxu0 %v651
    %681 = vmatprep.subr.mxu0 0.0
    %682 = vmatpush1.xpose.msra.mxu0 %v648
    %683 = vmatprep.subr.mxu0 0.0
    %684 = vmatpush1.xpose.msra.mxu0 %v645
    %685 = vmatprep.subr.mxu0 0.0
    %686 = vmatpush1.xpose.msra.mxu0 %v642
    %687 = vmatprep.subr.mxu0 0.0
    %688 = vmatpush1.xpose.msra.mxu0 %v639
    %689 = vmatprep.subr.mxu0 0.0
    %690 = vmatpush1.xpose.msra.mxu0 %v636
    %691 = vmatprep.subr.mxu0 0.0
    %692 = vmatpush2.xpose.msra.mxu0 0.0
    %693 = vmatprep.subr.mxu0 0.0
    %694 = vmatpush2.xpose.msra.mxu0 0.0
    %695 = vmatprep.subr.mxu0 0.0
    %696 = vmatpush2.xpose.msra.mxu0 0.0
    %697 = vmatprep.subr.mxu0 0.0
    %698 = vmatpush2.xpose.msra.mxu0 0.0
    %699 = vmatprep.subr.mxu0 0.0
    %700 = vmatpush2.xpose.msra.mxu0 0.0
    %701 = vmatprep.subr.mxu0 0.0
    %702 = vmatpush2.xpose.msra.mxu0 0.0
    %703 = vmatprep.subr.mxu0 0.0
    %704 = vmatpush2.xpose.msra.mxu0 0.0
    %705 = vmatprep.subr.mxu0 0.0
    %706 = vmatpush2.xpose.msra.mxu0 0.0
    %707 = vmatprep.subr.mxu0 0.0
    %708 = vmatpush2.xpose.msra.mxu0 0.0
    %709 = vmatprep.subr.mxu0 0.0
    %710 = vmatpush2.xpose.msra.mxu0 0.0
    %711 = vmatprep.subr.mxu0 0.0
    %712 = vmatpush2.xpose.msra.mxu0 0.0
    %713 = vmatprep.subr.mxu0 0.0
    %714 = vmatpush2.xpose.msra.mxu0 0.0
    %715 = vmatprep.subr.mxu0 0.0
    %716 = vmatpush2.xpose.msra.mxu0 0.0
    %717 = vmatprep.subr.mxu0 0.0
    %718 = vmatpush2.xpose.msra.mxu0 0.0
    %719 = vmatprep.subr.mxu0 0.0
    %720 = vmatpush2.xpose.msra.mxu0 0.0
    %721 = vmatprep.subr.mxu0 0.0
    %722 = vmatpush2.xpose.msra.mxu0 0.0
    %723 = vmatprep.mubr.f32.mxu0 0.0
    %724 = vmatmul.mubr.f32.gmra.mxu0 %v630
    %v725 = vpop.f32.mrf.mxu0
    %v726 = vadd.f32 %v49, %v725
    %v727 = vpop.f32.mrf.mxu0
    %728 = vmatprep.mubr.f32.mxu0 0.0
    %729 = vmatmul.mubr.f32.gmra.mxu0 %v633
    %v730 = vpop.f32.mrf.mxu0
    %v731 = vadd.f32 %v50, %v730
    %v732 = vpop.f32.mrf.mxu0
    %733 = vdwg.mxu0
    %vm734 = vcmask 523264
    %v735 = vsel %vm734, %v726, -inf
    %736 = vmax.xlane.f32.xlu0 %v735
    %v737 = vpop.xlane.xlu0 %736
    %v738 = vsel %vm734, %v731, -inf
    %739 = vmax.xlane.f32.xlu0 %v738
    %v740 = vpop.xlane.xlu0 %739
    %v741 = vsub.f32 %v726, %v737
    %v742 = vsub.f32 %v731, %v740
    %v743 = vmul.f32 %v741, 1.442695
    %v744 = vpow.pop %v743
    %v745 = vmul.f32 %v742, 1.442695
    %v746 = vpow.pop %v745
    %v748 = vsel %vm734, %v744, 0
    %v751 = vsel %vm734, %v746, 0
    %753 = vmatprep.subr.mxu0 0.0
    %754 = vmatpush1.msra.mxu0 0.0
    %755 = vmatprep.subr.mxu0 0.0
    %756 = vmatpush1.msra.mxu0 0.0
    %757 = vmatprep.subr.mxu0 0.0
    %758 = vmatpush1.msra.mxu0 0.0
    %759 = vmatprep.subr.mxu0 0.0
    %760 = vmatpush1.msra.mxu0 0.0
    %761 = vmatprep.subr.mxu0 0.0
    %762 = vmatpush1.msra.mxu0 0.0
    %763 = vmatprep.subr.mxu0 0.0
    %764 = vmatpush1.msra.mxu0 0.0
    %765 = vmatprep.subr.mxu0 0.0
    %766 = vmatpush1.msra.mxu0 0.0
    %767 = vmatprep.subr.mxu0 0.0
    %768 = vmatpush1.msra.mxu0 0.0
    %769 = vmatprep.subr.mxu0 0.0
    %770 = vmatpush1.msra.mxu0 %v58
    %771 = vmatprep.subr.mxu0 0.0
    %772 = vmatpush1.msra.mxu0 %v57
    %773 = vmatprep.subr.mxu0 0.0
    %774 = vmatpush1.msra.mxu0 %v56
    %775 = vmatprep.subr.mxu0 0.0
    %776 = vmatpush1.msra.mxu0 %v55
    %777 = vmatprep.subr.mxu0 0.0
    %778 = vmatpush1.msra.mxu0 %v54
    %779 = vmatprep.subr.mxu0 0.0
    %780 = vmatpush1.msra.mxu0 %v53
    %781 = vmatprep.subr.mxu0 0.0
    %782 = vmatpush1.msra.mxu0 %v52
    %783 = vmatprep.subr.mxu0 0.0
    %784 = vmatpush1.msra.mxu0 %v51
    %785 = vmatprep.subr.mxu0 0.0
    %786 = vmatpush2.msra.mxu0 0.0
    %787 = vmatprep.subr.mxu0 0.0
    %788 = vmatpush2.msra.mxu0 0.0
    %789 = vmatprep.subr.mxu0 0.0
    %790 = vmatpush2.msra.mxu0 0.0
    %791 = vmatprep.subr.mxu0 0.0
    %792 = vmatpush2.msra.mxu0 0.0
    %793 = vmatprep.subr.mxu0 0.0
    %794 = vmatpush2.msra.mxu0 0.0
    %795 = vmatprep.subr.mxu0 0.0
    %796 = vmatpush2.msra.mxu0 0.0
    %797 = vmatprep.subr.mxu0 0.0
    %798 = vmatpush2.msra.mxu0 0.0
    %799 = vmatprep.subr.mxu0 0.0
    %800 = vmatpush2.msra.mxu0 0.0
    %801 = vmatprep.subr.mxu0 0.0
    %802 = vmatpush2.msra.mxu0 0.0
    %803 = vmatprep.subr.mxu0 0.0
    %804 = vmatpush2.msra.mxu0 0.0
    %805 = vmatprep.subr.mxu0 0.0
    %806 = vmatpush2.msra.mxu0 0.0
    %807 = vmatprep.subr.mxu0 0.0
    %808 = vmatpush2.msra.mxu0 0.0
    %809 = vmatprep.subr.mxu0 0.0
    %810 = vmatpush2.msra.mxu0 0.0
    %811 = vmatprep.subr.mxu0 0.0
    %812 = vmatpush2.msra.mxu0 0.0
    %813 = vmatprep.subr.mxu0 0.0
    %814 = vmatpush2.msra.mxu0 0.0
    %815 = vmatprep.subr.mxu0 0.0
    %816 = vmatpush2.msra.mxu0 0.0
    %817 = vmatprep.mubr.f32.mxu0 0.0
    %818 = vmatmul.mubr.f32.gmra.mxu0 %v748
    %v819 = vpop.f32.mrf.mxu0
    %v820 = vadd.f32 1e-30, %v819
    %v821 = vpop.f32.mrf.mxu0
    %822 = vmatprep.mubr.f32.mxu0 0.0
    %823 = vmatmul.mubr.f32.gmra.mxu0 %v751
    %v824 = vpop.f32.mrf.mxu0
    %v825 = vadd.f32 1e-30, %v824
    %v826 = vpop.f32.mrf.mxu0
    %827 = vdwg.mxu0
    %v828 = vrcp.pop %v820
    %v829 = vrcp.pop %v825
    %v830 = vmul.f32 %v744, %v828
    %v831 = vmul.f32 %v746, %v829
    %v833 = vsel %vm734, %v830, 0
    %v836 = vsel %vm734, %v831, 0
    %838 = vmatprep.subr.mxu0 0.0
    %839 = vmatpush1.msra.mxu0 0.0
    %840 = vmatprep.subr.mxu0 0.0
    %841 = vmatpush1.msra.mxu0 0.0
    %842 = vmatprep.subr.mxu0 0.0
    %843 = vmatpush1.msra.mxu0 0.0
    %844 = vmatprep.subr.mxu0 0.0
    %845 = vmatpush1.msra.mxu0 0.0
    %846 = vmatprep.subr.mxu0 0.0
    %847 = vmatpush1.msra.mxu0 0.0
    %848 = vmatprep.subr.mxu0 0.0
    %849 = vmatpush1.msra.mxu0 0.0
    %850 = vmatprep.subr.mxu0 0.0
    %851 = vmatpush1.msra.mxu0 0.0
    %852 = vmatprep.subr.mxu0 0.0
    %853 = vmatpush1.msra.mxu0 0.0
    %854 = vmatprep.subr.mxu0 0.0
    %855 = vmatpush1.msra.mxu0 %v628
    %856 = vmatprep.subr.mxu0 0.0
    %857 = vmatpush1.msra.mxu0 %v627
    %858 = vmatprep.subr.mxu0 0.0
    %859 = vmatpush1.msra.mxu0 %v626
    %860 = vmatprep.subr.mxu0 0.0
    %861 = vmatpush1.msra.mxu0 %v625
    %862 = vmatprep.subr.mxu0 0.0
    %863 = vmatpush1.msra.mxu0 %v624
    %864 = vmatprep.subr.mxu0 0.0
    %865 = vmatpush1.msra.mxu0 %v623
    %866 = vmatprep.subr.mxu0 0.0
    %867 = vmatpush1.msra.mxu0 %v622
    %868 = vmatprep.subr.mxu0 0.0
    %869 = vmatpush1.msra.mxu0 %v621
    %870 = vmatprep.subr.mxu0 0.0
    %871 = vmatpush2.msra.mxu0 0.0
    %872 = vmatprep.subr.mxu0 0.0
    %873 = vmatpush2.msra.mxu0 0.0
    %874 = vmatprep.subr.mxu0 0.0
    %875 = vmatpush2.msra.mxu0 0.0
    %876 = vmatprep.subr.mxu0 0.0
    %877 = vmatpush2.msra.mxu0 0.0
    %878 = vmatprep.subr.mxu0 0.0
    %879 = vmatpush2.msra.mxu0 0.0
    %880 = vmatprep.subr.mxu0 0.0
    %881 = vmatpush2.msra.mxu0 0.0
    %882 = vmatprep.subr.mxu0 0.0
    %883 = vmatpush2.msra.mxu0 0.0
    %884 = vmatprep.subr.mxu0 0.0
    %885 = vmatpush2.msra.mxu0 0.0
    %886 = vmatprep.subr.mxu0 0.0
    %887 = vmatpush2.msra.mxu0 0.0
    %888 = vmatprep.subr.mxu0 0.0
    %889 = vmatpush2.msra.mxu0 0.0
    %890 = vmatprep.subr.mxu0 0.0
    %891 = vmatpush2.msra.mxu0 0.0
    %892 = vmatprep.subr.mxu0 0.0
    %893 = vmatpush2.msra.mxu0 0.0
    %894 = vmatprep.subr.mxu0 0.0
    %895 = vmatpush2.msra.mxu0 0.0
    %896 = vmatprep.subr.mxu0 0.0
    %897 = vmatpush2.msra.mxu0 0.0
    %898 = vmatprep.subr.mxu0 0.0
    %899 = vmatpush2.msra.mxu0 0.0
    %900 = vmatprep.subr.mxu0 0.0
    %901 = vmatpush2.msra.mxu0 0.0
    %902 = vmatprep.mubr.f32.mxu0 0.0
    %903 = vmatmul.mubr.f32.gmra.mxu0 %v833
    %v904 = vpop.f32.mrf.mxu0
    %v905 = vadd.f32 0.0, %v904
    %v906 = vpop.f32.mrf.mxu0
    %907 = vmatprep.mubr.f32.mxu0 0.0
    %908 = vmatmul.mubr.f32.gmra.mxu0 %v836
    %v909 = vpop.f32.mrf.mxu0
    %v910 = vadd.f32 0.0, %v909
    %v911 = vpop.f32.mrf.mxu0
    %912 = vdwg.mxu0
    %v913 = vadd.f32 %v40, %v905
    %v914 = vadd.f32 %v41, %v910
    %v915 = vsel %vm95, %v913, 0.0
    %916 = vadd.xlane.f32.xlu0 %v915
    %v917 = vpop.xlane.xlu0 %916
    %v918 = vsel %vm95, %v914, 0.0
    %919 = vadd.xlane.f32.xlu0 %v918
    %v920 = vpop.xlane.xlu0 %919
    %v921 = vmul.f32 %v917, %v102
    %v922 = vmul.f32 %v920, %v102
    %v923 = vsub.f32 %v913, %v921
    %v924 = vsub.f32 %v914, %v922
    %v925 = vmul.f32 %v923, %v923
    %v926 = vmul.f32 %v924, %v924
    %v927 = vsel %vm95, %v925, 0.0
    %928 = vadd.xlane.f32.xlu0 %v927
    %v929 = vpop.xlane.xlu0 %928
    %v930 = vsel %vm95, %v926, 0.0
    %931 = vadd.xlane.f32.xlu0 %v930
    %v932 = vpop.xlane.xlu0 %931
    %v933 = vmul.f32 %v929, %v102
    %v934 = vmul.f32 %v932, %v102
    %v935 = vadd.f32 %v933, 1e-05
    %v936 = vadd.f32 %v934, 1e-05
    %v937 = vrsqrt.pop %v935
    %v938 = vrsqrt.pop %v936
    %v939 = vmul.f32 %v923, %v937
    %v940 = vmul.f32 %v924, %v938
    %v941 = vmul.f32 %v939, %v126
    %v942 = vmul.f32 %v940, %v126
    %v943 = vadd.f32 %v941, %v132
    %v944 = vadd.f32 %v942, %v132
    %v945 = vlaneseq
    %v946 = vshrl.u32 %v945, 7
    %v947 = vsub.s32 0, %v946
    %v948 = vrot.slane %v48, %v947
    %v950 = vsel %vm95, %v943, 0
    %v953 = vsel %vm95, %v944, 0
    %955 = vmatprep.subr.mxu0 0.0
    %956 = vmatpush1.msra.mxu0 0.0
    %957 = vmatprep.subr.mxu0 0.0
    %958 = vmatpush1.msra.mxu0 0.0
    %959 = vmatprep.subr.mxu0 0.0
    %960 = vmatpush1.msra.mxu0 0.0
    %961 = vmatprep.subr.mxu0 0.0
    %962 = vmatpush1.msra.mxu0 0.0
    %963 = vmatprep.subr.mxu0 0.0
    %964 = vmatpush1.msra.mxu0 0.0
    %965 = vmatprep.subr.mxu0 0.0
    %966 = vmatpush1.msra.mxu0 0.0
    %967 = vmatprep.subr.mxu0 0.0
    %968 = vmatpush1.msra.mxu0 0.0
    %969 = vmatprep.subr.mxu0 0.0
    %970 = vmatpush1.msra.mxu0 0.0
    %971 = vmatprep.subr.mxu0 0.0
    %972 = vmatpush1.msra.mxu0 0.0
    %973 = vmatprep.subr.mxu0 0.0
    %974 = vmatpush1.msra.mxu0 0.0
    %975 = vmatprep.subr.mxu0 0.0
    %976 = vmatpush1.msra.mxu0 0.0
    %977 = vmatprep.subr.mxu0 0.0
    %978 = vmatpush1.msra.mxu0 0.0
    %979 = vmatprep.subr.mxu0 0.0
    %980 = vmatpush1.msra.mxu0 %v90
    %981 = vmatprep.subr.mxu0 0.0
    %982 = vmatpush1.msra.mxu0 %v89
    %983 = vmatprep.subr.mxu0 0.0
    %984 = vmatpush1.msra.mxu0 %v88
    %985 = vmatprep.subr.mxu0 0.0
    %986 = vmatpush1.msra.mxu0 %v87
    %987 = vmatprep.subr.mxu0 0.0
    %988 = vmatpush2.msra.mxu0 0.0
    %989 = vmatprep.subr.mxu0 0.0
    %990 = vmatpush2.msra.mxu0 0.0
    %991 = vmatprep.subr.mxu0 0.0
    %992 = vmatpush2.msra.mxu0 0.0
    %993 = vmatprep.subr.mxu0 0.0
    %994 = vmatpush2.msra.mxu0 0.0
    %995 = vmatprep.subr.mxu0 0.0
    %996 = vmatpush2.msra.mxu0 0.0
    %997 = vmatprep.subr.mxu0 0.0
    %998 = vmatpush2.msra.mxu0 0.0
    %999 = vmatprep.subr.mxu0 0.0
    %1000 = vmatpush2.msra.mxu0 0.0
    %1001 = vmatprep.subr.mxu0 0.0
    %1002 = vmatpush2.msra.mxu0 0.0
    %1003 = vmatprep.subr.mxu0 0.0
    %1004 = vmatpush2.msra.mxu0 0.0
    %1005 = vmatprep.subr.mxu0 0.0
    %1006 = vmatpush2.msra.mxu0 0.0
    %1007 = vmatprep.subr.mxu0 0.0
    %1008 = vmatpush2.msra.mxu0 0.0
    %1009 = vmatprep.subr.mxu0 0.0
    %1010 = vmatpush2.msra.mxu0 0.0
    %1011 = vmatprep.subr.mxu0 0.0
    %1012 = vmatpush2.msra.mxu0 0.0
    %1013 = vmatprep.subr.mxu0 0.0
    %1014 = vmatpush2.msra.mxu0 0.0
    %1015 = vmatprep.subr.mxu0 0.0
    %1016 = vmatpush2.msra.mxu0 0.0
    %1017 = vmatprep.subr.mxu0 0.0
    %1018 = vmatpush2.msra.mxu0 0.0
    %1019 = vmatprep.mubr.f32.mxu0 0.0
    %1020 = vmatmul.mubr.f32.gmra.mxu0 %v950
    %v1021 = vpop.f32.mrf.mxu0
    %v1022 = vadd.f32 %v948, %v1021
    %v1023 = vpop.f32.mrf.mxu0
    %1024 = vmatprep.mubr.f32.mxu0 0.0
    %1025 = vmatmul.mubr.f32.gmra.mxu0 %v953
    %v1026 = vpop.f32.mrf.mxu0
    %v1027 = vadd.f32 %v948, %v1026
    %v1028 = vpop.f32.mrf.mxu0
    %1029 = vdwg.mxu0
    %v1030 = vmul.f32 %v1022, 0.5
    %v1031 = vmul.f32 %v1027, 0.5
    %v1032 = vmul.f32 %v1022, 0.70710677
    %v1033 = vmul.f32 %v1027, 0.70710677
    %v1034 = verf.f32.pop %v1032
    %v1035 = verf.f32.pop %v1033
    %v1036 = vadd.f32 %v1034, 1.0
    %v1037 = vadd.f32 %v1035, 1.0
    %v1038 = vmul.f32 %v1030, %v1036
    %v1039 = vmul.f32 %v1031, %v1037
    %v1040 = vlaneseq
    %v1041 = vshrl.u32 %v1040, 7
    %v1042 = vsub.s32 0, %v1041
    %v1043 = vrot.slane %v47, %v1042
    %1044 = vmatprep.subr.mxu0 0.0
    %1045 = vmatpush1.xpose.msra.mxu0 0.0
    %1046 = vmatprep.subr.mxu0 0.0
    %1047 = vmatpush1.xpose.msra.mxu0 0.0
    %1048 = vmatprep.subr.mxu0 0.0
    %1049 = vmatpush1.xpose.msra.mxu0 0.0
    %1050 = vmatprep.subr.mxu0 0.0
    %1051 = vmatpush1.xpose.msra.mxu0 0.0
    %1052 = vmatprep.subr.mxu0 0.0
    %1053 = vmatpush1.xpose.msra.mxu0 0.0
    %1054 = vmatprep.subr.mxu0 0.0
    %1055 = vmatpush1.xpose.msra.mxu0 0.0
    %1056 = vmatprep.subr.mxu0 0.0
    %1057 = vmatpush1.xpose.msra.mxu0 0.0
    %1058 = vmatprep.subr.mxu0 0.0
    %1059 = vmatpush1.xpose.msra.mxu0 0.0
    %1060 = vmatprep.subr.mxu0 0.0
    %1061 = vmatpush1.xpose.msra.mxu0 0.0
    %1062 = vmatprep.subr.mxu0 0.0
    %1063 = vmatpush1.xpose.msra.mxu0 0.0
    %1064 = vmatprep.subr.mxu0 0.0
    %1065 = vmatpush1.xpose.msra.mxu0 0.0
    %1066 = vmatprep.subr.mxu0 0.0
    %1067 = vmatpush1.xpose.msra.mxu0 0.0
    %1068 = vmatprep.subr.mxu0 0.0
    %1069 = vmatpush1.xpose.msra.mxu0 %v94
    %1070 = vmatprep.subr.mxu0 0.0
    %1071 = vmatpush1.xpose.msra.mxu0 %v93
    %1072 = vmatprep.subr.mxu0 0.0
    %1073 = vmatpush1.xpose.msra.mxu0 %v92
    %1074 = vmatprep.subr.mxu0 0.0
    %1075 = vmatpush1.xpose.msra.mxu0 %v91
    %1076 = vmatprep.subr.mxu0 0.0
    %1077 = vmatpush2.xpose.msra.mxu0 0.0
    %1078 = vmatprep.subr.mxu0 0.0
    %1079 = vmatpush2.xpose.msra.mxu0 0.0
    %1080 = vmatprep.subr.mxu0 0.0
    %1081 = vmatpush2.xpose.msra.mxu0 0.0
    %1082 = vmatprep.subr.mxu0 0.0
    %1083 = vmatpush2.xpose.msra.mxu0 0.0
    %1084 = vmatprep.subr.mxu0 0.0
    %1085 = vmatpush2.xpose.msra.mxu0 0.0
    %1086 = vmatprep.subr.mxu0 0.0
    %1087 = vmatpush2.xpose.msra.mxu0 0.0
    %1088 = vmatprep.subr.mxu0 0.0
    %1089 = vmatpush2.xpose.msra.mxu0 0.0
    %1090 = vmatprep.subr.mxu0 0.0
    %1091 = vmatpush2.xpose.msra.mxu0 0.0
    %1092 = vmatprep.subr.mxu0 0.0
    %1093 = vmatpush2.xpose.msra.mxu0 0.0
    %1094 = vmatprep.subr.mxu0 0.0
    %1095 = vmatpush2.xpose.msra.mxu0 0.0
    %1096 = vmatprep.subr.mxu0 0.0
    %1097 = vmatpush2.xpose.msra.mxu0 0.0
    %1098 = vmatprep.subr.mxu0 0.0
    %1099 = vmatpush2.xpose.msra.mxu0 0.0
    %1100 = vmatprep.subr.mxu0 0.0
    %1101 = vmatpush2.xpose.msra.mxu0 0.0
    %1102 = vmatprep.subr.mxu0 0.0
    %1103 = vmatpush2.xpose.msra.mxu0 0.0
    %1104 = vmatprep.subr.mxu0 0.0
    %1105 = vmatpush2.xpose.msra.mxu0 0.0
    %1106 = vmatprep.subr.mxu0 0.0
    %1107 = vmatpush2.xpose.msra.mxu0 0.0
    %1108 = vmatprep.mubr.f32.mxu0 0.0
    %1109 = vmatmul.mubr.f32.gmra.mxu0 %v1038
    %v1110 = vpop.f32.mrf.mxu0
    %v1111 = vadd.f32 %v1043, %v1110
    %v1112 = vpop.f32.mrf.mxu0
    %1113 = vmatprep.mubr.f32.mxu0 0.0
    %1114 = vmatmul.mubr.f32.gmra.mxu0 %v1039
    %v1115 = vpop.f32.mrf.mxu0
    %v1116 = vadd.f32 %v1043, %v1115
    %v1117 = vpop.f32.mrf.mxu0
    %1118 = vdwg.mxu0
    %v1119 = vadd.f32 %v913, %v1111
    %v1120 = vadd.f32 %v914, %v1116
    %1121 = vst.msk [vmem:[#allocation7] sm:$0xff] %vm95, %v1119
    %1122 = vst.msk [vmem:[#allocation7 + $0x8] sm:$0xff] %vm95, %v1120
    // Predicated region
    $region18: #{gpt_block.1} parent=1 // pred_check
      _
    $region19: #{gpt_block.1} parent=1 // pred_check_branch
      %1124 = sbr.rel (0) target = $region21
    $region20: #{gpt_block.1} parent=1 // pred_region
      %s1126 = ssub.s32 256, 256
      %1127 = vsyncadd [#allocation4], %s1126
      %s1128 = sshll.u32 [#allocation7], 4
      %s1129 = int_to_ptr.vmem [resolvable:$true] %s1128
      %1134 = dma.vmem_to_hbm [thread:$0]  %s1129, 256, %s2, [#allocation4], 128, 128, 8
    $region21: #{gpt_block.1} parent=1 // pred_fallthru
      _
    // Predicated region
    $region22: #{gpt_block.1} parent=1 // pred_check
      _
    $region23: #{gpt_block.1} parent=1 // pred_check_branch
      %1136 = sbr.rel (0) target = $region25
    $region24: #{gpt_block.1} parent=1 // pred_region
      %1137 = dma.done [#allocation4], 256
    $region25: #{gpt_block.1} parent=1 // pred_fallthru
      _
    %1138 = vsyncpa [#allocation3], 1
    %1139 = vsyncpa [#allocation6], 1
    %1140 = vsyncpa [#allocation4], 1

</llo_original>
